<compile_context>
chip_gen: v7x
topology: tpu7x:2x2x1
jax: 0.10.0
libtpu: 0.0.40
codegen_flags: <defaults>
</compile_context>

<pallas_src>
import jax
import jax.numpy as jnp
import numpy as np
from jax.experimental import pallas as pl
from jax.experimental.pallas import tpu as pltpu


def _make_kernel(H, W, C, Cout, NB):
    HW = H * W
    ROWS = NB * C

    def kernel(x_ref, wdwb1_ref, wpwb2_ref, o_ref):
        # x_ref:     (ROWS, HW)      NB images stacked on sublanes, lanes = H*W
        # wdwb1_ref: (ROWS, 10)      9 depthwise taps (BN1 scale folded) + BN1 shift
        # wpwb2_ref: (Cout, C + 1)   pointwise weights (BN2 scale folded) + BN2 shift
        # o_ref:     (NB*Cout, HW)   lane-dense output block

        x = x_ref[...]
        wdw = wdwb1_ref[:, 0:9]                    # (ROWS, 9)
        b1 = wdwb1_ref[:, 9:10]                    # (ROWS, 1)
        wpw = wpwb2_ref[:, 0:C]                    # (Cout, C)
        b2 = wpwb2_ref[:, C:C + 1]                 # (Cout, 1)

        # Boundary masks from iota (VPU compares; no extra input DMA).
        lane = jax.lax.broadcasted_iota(jnp.int32, (1, HW), 1)
        col = lane % W
        m_left = (col >= 1).astype(jnp.float32)            # w-1 in-bounds
        m_right = (col <= W - 2).astype(jnp.float32)        # w+1 in-bounds
        m_top = (lane >= W).astype(jnp.float32)              # h-1 in-bounds
        m_bot = (lane < (H - 1) * W).astype(jnp.float32)     # h+1 in-bounds

        # Three dx-shifted variants (XLU lane rolls); dx masks applied once and
        # reused for all three dy values.
        x_l = pltpu.roll(x, 1 % HW, axis=1) * m_left         # tap x[.., w-1]
        x_r = pltpu.roll(x, (HW - 1) % HW, axis=1) * m_right  # tap x[.., w+1]
        variants = (x_l, x, x_r)

        # ---- depthwise 3x3: accumulator initialized with the BN1 shift ----
        acc = jnp.broadcast_to(b1, (ROWS, HW))
        for dy_i, dy in enumerate((-1, 0, 1)):
            part = None
            for dx_i in range(3):
                v = variants[dx_i]
                if dy != 0:
                    v = pltpu.roll(v, (-dy * W) % HW, axis=1)  # row shift
                k = dy_i * 3 + dx_i
                term = v * wdw[:, k:k + 1]                     # per-row coeff
                part = term if part is None else part + term
            if dy == -1:
                part = part * m_top
            elif dy == 1:
                part = part * m_bot
            acc = acc + part

        dw = jnp.maximum(acc, 0.0)                             # (ROWS, HW)

        # ---- pointwise 1x1 conv per packed image, bias-initialized ----
        for n in range(NB):
            dwn = dw[n * C:(n + 1) * C, :]                     # (C, HW)
            if C * Cout > 1024:
                # Large contraction: use the MXU.
                y = jnp.dot(wpw, dwn, preferred_element_type=jnp.float32)
                y = y + jnp.broadcast_to(b2, (Cout, HW))
            else:
                # Tiny K=C, M=Cout: rank-1 VPU FMAs beat MXU fill/drain.
                y = jnp.broadcast_to(b2, (Cout, HW))
                for c in range(C):
                    y = y + wpw[:, c:c + 1] * dwn[c:c + 1, :]
            o_ref[n * Cout:(n + 1) * Cout, :] = jnp.maximum(y, 0.0)

    return kernel


def _fold_bn(gamma, beta, mean, var, eps=1e-5):
    scale = gamma / jnp.sqrt(var + eps)
    shift = beta - mean * scale
    return scale, shift


def dsconv3x3_prepare(w_dw_torch, bn1, w_pw_torch, bn2, eps=1e-5):
    """Fold eval-mode BN into the conv weights; concatenate shifts. Torch layouts in."""
    C = w_dw_torch.shape[0]
    s1, t1 = _fold_bn(*bn1, eps)
    s2, t2 = _fold_bn(*bn2, eps)
    wdw_eff = w_dw_torch[:, 0].reshape(C, 9) * s1[:, None]        # (C, 9)
    wdwb1 = jnp.concatenate([wdw_eff, t1[:, None]], axis=1)       # (C, 10)
    wpw_eff = w_pw_torch[:, :, 0, 0] * s2[:, None]                # (Cout, C)
    wpwb2 = jnp.concatenate([wpw_eff, t2[:, None]], axis=1)       # (Cout, C+1)
    return wdwb1, wpwb2


def _pick_nb(N, C):
    """Images per grid step so NB*C reaches a full 8-sublane f32 vreg height."""
    target = max(1, -(-8 // C))          # ceil(8 / C)
    for cand in range(min(target, N), 0, -1):
        if N % cand == 0:
            return cand
    return 1


def dsconv3x3_nchw(x_nchw, params):
    """Drop-in equivalent of PyTorch DSConv3x3.forward (eval). NCHW in / NCHW out.

    The only HBM traffic is the kernel's own read/write; the reshapes below are
    free row-major metadata changes (no pad / no transpose wrapper-side).
    """
    wdwb1, wpwb2 = params
    N, C, H, W = x_nchw.shape
    Cout = wpwb2.shape[0]
    HW = H * W

    NB = _pick_nb(N, C)
    ROWS = NB * C

    x_flat = x_nchw.reshape(N * C, HW)
    wdwb1_t = jnp.tile(wdwb1, (NB, 1))           # repeat per packed image: (ROWS, 10)

    kernel = _make_kernel(H, W, C, Cout, NB)

    out = pl.pallas_call(
        kernel,
        out_shape=jax.ShapeDtypeStruct((N * Cout, HW), jnp.float32),
        grid_spec=pltpu.PrefetchScalarGridSpec(
            num_scalar_prefetch=0,
            grid=(N // NB,),
            in_specs=[
                pl.BlockSpec((ROWS, HW), lambda s: (s, 0)),
                pl.BlockSpec((ROWS, 10), lambda s: (0, 0)),
                pl.BlockSpec((Cout, C + 1), lambda s: (0, 0)),
            ],
            out_specs=pl.BlockSpec((NB * Cout, HW), lambda s: (s, 0)),
        ),
        compiler_params=pltpu.CompilerParams(
            dimension_semantics=("parallel",)),
    )(x_flat, wdwb1_t, wpwb2)

    return out.reshape(N, Cout, H, W)


def _reference_nchw(x, w_dw_torch, bn1, w_pw_torch, bn2, eps=1e-5):
    """Plain-JAX reference of the same math (NCHW)."""
    C = x.shape[1]
    s1, t1 = _fold_bn(*bn1, eps)
    s2, t2 = _fold_bn(*bn2, eps)
    dw = jax.lax.conv_general_dilated(
        x, w_dw_torch, window_strides=(1, 1), padding=((1, 1), (1, 1)),
        dimension_numbers=("NCHW", "OIHW", "NCHW"), feature_group_count=C,
        precision=jax.lax.Precision.HIGHEST)
    dw = jnp.maximum(dw * s1[None, :, None, None] + t1[None, :, None, None], 0.0)
    y = jax.lax.conv_general_dilated(
        dw, w_pw_torch, window_strides=(1, 1), padding="VALID",
        dimension_numbers=("NCHW", "OIHW", "NCHW"),
        precision=jax.lax.Precision.HIGHEST)
    return jnp.maximum(y * s2[None, :, None, None] + t2[None, :, None, None], 0.0)


if __name__ == "__main__":
    # Small shapes consistent with the module: N=2, C_in=4, H=W=16, C_out=8.
    N, Cin, Cout, H, W = 2, 4, 8, 16, 16

    key = jax.random.PRNGKey(0)
    ks = jax.random.split(key, 12)

    x_nchw = jax.random.normal(ks[0], (N, Cin, H, W), jnp.float32)

    # Torch-layout parameters (eval-mode BN with synthetic running stats).
    w_dw_torch = jax.random.normal(ks[1], (Cin, 1, 3, 3), jnp.float32) * 0.3
    g1 = jax.random.uniform(ks[2], (Cin,), jnp.float32, 0.5, 1.5)
    be1 = jax.random.normal(ks[3], (Cin,), jnp.float32) * 0.1
    m1 = jax.random.normal(ks[4], (Cin,), jnp.float32) * 0.1
    v1 = jax.random.uniform(ks[5], (Cin,), jnp.float32, 0.5, 1.5)

    w_pw_torch = jax.random.normal(ks[6], (Cout, Cin, 1, 1), jnp.float32) * 0.3
    g2 = jax.random.uniform(ks[7], (Cout,), jnp.float32, 0.5, 1.5)
    be2 = jax.random.normal(ks[8], (Cout,), jnp.float32) * 0.1
    m2 = jax.random.normal(ks[9], (Cout,), jnp.float32) * 0.1
    v2 = jax.random.uniform(ks[10], (Cout,), jnp.float32, 0.5, 1.5)

    params = dsconv3x3_prepare(w_dw_torch, (g1, be1, m1, v1),
                               w_pw_torch, (g2, be2, m2, v2))

    fwd = jax.jit(dsconv3x3_nchw)
    y = jax.block_until_ready(fwd(x_nchw, params))

    # Sanity check against a plain-JAX reference of the same math.
    y_ref = _reference_nchw(x_nchw, w_dw_torch, (g1, be1, m1, v1),
                            w_pw_torch, (g2, be2, m2, v2))
    np.testing.assert_allclose(np.asarray(y), np.asarray(y_ref),
                               rtol=1e-4, atol=1e-4)

    print("KERNEL_OK")
</pallas_src>

<mosaic_0001>
module attributes {stable_mosaic.version = 11 : i64} {
  func.func @kernel(%arg0: i32, %arg1: memref<8x256xf32, #tpu.memory_space<vmem>>, %arg2: memref<8x10xf32, #tpu.memory_space<vmem>>, %arg3: memref<8x5xf32, #tpu.memory_space<vmem>>, %arg4: memref<16x256xf32, #tpu.memory_space<vmem>>) attributes {dimension_semantics = [#tpu.dimension_semantics<parallel>], iteration_bounds = array<i64: 1>, scalar_prefetch = 0 : i64, scratch_operands = 0 : i64, tpu.core_type = #tpu.core_type<tc>, window_params = [{transform_indices = @transform_0, window_bounds = array<i64: 8, 256>}, {pipeline_mode = #tpu.pipeline_mode<synchronous>, transform_indices = @transform_1, window_bounds = array<i64: 8, 10>}, {pipeline_mode = #tpu.pipeline_mode<synchronous>, transform_indices = @transform_2, window_bounds = array<i64: 8, 5>}, {transform_indices = @transform_3, window_bounds = array<i64: 16, 256>}]} {
    %c0 = arith.constant 0 : index
    %c0_0 = arith.constant 0 : index
    %0 = vector.load %arg1[%c0, %c0_0] : memref<8x256xf32, #tpu.memory_space<vmem>>, vector<8x256xf32>
    %c0_1 = arith.constant 0 : index
    %c0_2 = arith.constant 0 : index
    %1 = vector.load %arg2[%c0_1, %c0_2] : memref<8x10xf32, #tpu.memory_space<vmem>>, vector<8x9xf32>
    %c0_3 = arith.constant 0 : index
    %c9 = arith.constant 9 : index
    %2 = vector.load %arg2[%c0_3, %c9] : memref<8x10xf32, #tpu.memory_space<vmem>>, vector<8x1xf32>
    %c0_4 = arith.constant 0 : index
    %c0_5 = arith.constant 0 : index
    %3 = vector.load %arg3[%c0_4, %c0_5] : memref<8x5xf32, #tpu.memory_space<vmem>>, vector<8x4xf32>
    %c0_6 = arith.constant 0 : index
    %c4 = arith.constant 4 : index
    %4 = vector.load %arg3[%c0_6, %c4] : memref<8x5xf32, #tpu.memory_space<vmem>>, vector<8x1xf32>
    %5 = tpu.iota {dimensions = array<i32: 1>} : vector<1x256xi32>
    %c16_i32 = arith.constant 16 : i32
    %c0_i32 = arith.constant 0 : i32
    %6 = arith.cmpi eq, %c16_i32, %c0_i32 : i32
    %c1_i32 = arith.constant 1 : i32
    %7 = arith.select %6, %c1_i32, %c16_i32 : i32
    %8 = vector.broadcast %7 : i32 to vector<1x256xi32>
    %9 = arith.remsi %5, %8 : vector<1x256xi32>
    %c0_i32_7 = arith.constant 0 : i32
    %10 = vector.broadcast %c0_i32_7 : i32 to vector<1x256xi32>
    %11 = arith.cmpi ne, %9, %10 : vector<1x256xi32>
    %c0_i32_8 = arith.constant 0 : i32
    %12 = vector.broadcast %c0_i32_8 : i32 to vector<1x256xi32>
    %13 = arith.cmpi slt, %9, %12 : vector<1x256xi32>
    %c0_i32_9 = arith.constant 0 : i32
    %14 = arith.cmpi slt, %7, %c0_i32_9 : i32
    %15 = vector.broadcast %14 : i1 to vector<1x256xi1>
    %16 = vector.broadcast %15 : vector<1x256xi1> to vector<1x256xi1>
    %17 = arith.xori %13, %16 : vector<1x256xi1>
    %18 = arith.andi %17, %11 : vector<1x256xi1>
    %19 = vector.broadcast %7 : i32 to vector<1x256xi32>
    %20 = arith.addi %9, %19 : vector<1x256xi32>
    %21 = arith.select %18, %20, %9 : vector<1x256xi1>, vector<1x256xi32>
    %c1_i32_10 = arith.constant 1 : i32
    %22 = vector.broadcast %c1_i32_10 : i32 to vector<1x256xi32>
    %23 = arith.cmpi sge, %21, %22 : vector<1x256xi32>
    %24 = arith.extui %23 : vector<1x256xi1> to vector<1x256xi32>
    %25 = arith.sitofp %24 : vector<1x256xi32> to vector<1x256xf32>
    %c14_i32 = arith.constant 14 : i32
    %26 = vector.broadcast %c14_i32 : i32 to vector<1x256xi32>
    %27 = arith.cmpi sle, %21, %26 : vector<1x256xi32>
    %28 = arith.extui %27 : vector<1x256xi1> to vector<1x256xi32>
    %29 = arith.sitofp %28 : vector<1x256xi32> to vector<1x256xf32>
    %c16_i32_11 = arith.constant 16 : i32
    %30 = vector.broadcast %c16_i32_11 : i32 to vector<1x256xi32>
    %31 = arith.cmpi sge, %5, %30 : vector<1x256xi32>
    %32 = arith.extui %31 : vector<1x256xi1> to vector<1x256xi32>
    %33 = arith.sitofp %32 : vector<1x256xi32> to vector<1x256xf32>
    %c240_i32 = arith.constant 240 : i32
    %34 = vector.broadcast %c240_i32 : i32 to vector<1x256xi32>
    %35 = arith.cmpi slt, %5, %34 : vector<1x256xi32>
    %36 = arith.extui %35 : vector<1x256xi1> to vector<1x256xi32>
    %37 = arith.sitofp %36 : vector<1x256xi32> to vector<1x256xf32>
    %c1_i32_12 = arith.constant 1 : i32
    %38 = tpu.dynamic_rotate %0 by %c1_i32_12 dim 1 : vector<8x256xf32>, i32 -> vector<8x256xf32>
    %39 = vector.broadcast %25 : vector<1x256xf32> to vector<8x256xf32>
    %40 = arith.mulf %38, %39 : vector<8x256xf32>
    %c255_i32 = arith.constant 255 : i32
    %41 = tpu.dynamic_rotate %0 by %c255_i32 dim 1 : vector<8x256xf32>, i32 -> vector<8x256xf32>
    %42 = vector.broadcast %29 : vector<1x256xf32> to vector<8x256xf32>
    %43 = arith.mulf %41, %42 : vector<8x256xf32>
    %44 = vector.shape_cast %2 : vector<8x1xf32> to vector<8x1xf32>
    %45 = vector.broadcast %44 : vector<8x1xf32> to vector<8x256xf32>
    %c16_i32_13 = arith.constant 16 : i32
    %46 = tpu.dynamic_rotate %40 by %c16_i32_13 dim 1 : vector<8x256xf32>, i32 -> vector<8x256xf32>
    %47 = vector.extract_strided_slice %1 {offsets = [0, 0], sizes = [8, 1], strides = [1, 1]} : vector<8x9xf32> to vector<8x1xf32>
    %48 = vector.broadcast %47 : vector<8x1xf32> to vector<8x256xf32>
    %49 = arith.mulf %46, %48 : vector<8x256xf32>
    %c16_i32_14 = arith.constant 16 : i32
    %50 = tpu.dynamic_rotate %0 by %c16_i32_14 dim 1 : vector<8x256xf32>, i32 -> vector<8x256xf32>
    %51 = vector.extract_strided_slice %1 {offsets = [0, 1], sizes = [8, 1], strides = [1, 1]} : vector<8x9xf32> to vector<8x1xf32>
    %52 = vector.broadcast %51 : vector<8x1xf32> to vector<8x256xf32>
    %53 = arith.mulf %50, %52 : vector<8x256xf32>
    %54 = arith.addf %49, %53 : vector<8x256xf32>
    %c16_i32_15 = arith.constant 16 : i32
    %55 = tpu.dynamic_rotate %43 by %c16_i32_15 dim 1 : vector<8x256xf32>, i32 -> vector<8x256xf32>
    %56 = vector.extract_strided_slice %1 {offsets = [0, 2], sizes = [8, 1], strides = [1, 1]} : vector<8x9xf32> to vector<8x1xf32>
    %57 = vector.broadcast %56 : vector<8x1xf32> to vector<8x256xf32>
    %58 = arith.mulf %55, %57 : vector<8x256xf32>
    %59 = arith.addf %54, %58 : vector<8x256xf32>
    %60 = vector.broadcast %33 : vector<1x256xf32> to vector<8x256xf32>
    %61 = arith.mulf %59, %60 : vector<8x256xf32>
    %62 = arith.addf %45, %61 : vector<8x256xf32>
    %63 = vector.extract_strided_slice %1 {offsets = [0, 3], sizes = [8, 1], strides = [1, 1]} : vector<8x9xf32> to vector<8x1xf32>
    %64 = vector.broadcast %63 : vector<8x1xf32> to vector<8x256xf32>
    %65 = arith.mulf %40, %64 : vector<8x256xf32>
    %66 = vector.extract_strided_slice %1 {offsets = [0, 4], sizes = [8, 1], strides = [1, 1]} : vector<8x9xf32> to vector<8x1xf32>
    %67 = vector.broadcast %66 : vector<8x1xf32> to vector<8x256xf32>
    %68 = arith.mulf %0, %67 : vector<8x256xf32>
    %69 = arith.addf %65, %68 : vector<8x256xf32>
    %70 = vector.extract_strided_slice %1 {offsets = [0, 5], sizes = [8, 1], strides = [1, 1]} : vector<8x9xf32> to vector<8x1xf32>
    %71 = vector.broadcast %70 : vector<8x1xf32> to vector<8x256xf32>
    %72 = arith.mulf %43, %71 : vector<8x256xf32>
    %73 = arith.addf %69, %72 : vector<8x256xf32>
    %74 = arith.addf %62, %73 : vector<8x256xf32>
    %c240_i32_16 = arith.constant 240 : i32
    %75 = tpu.dynamic_rotate %40 by %c240_i32_16 dim 1 : vector<8x256xf32>, i32 -> vector<8x256xf32>
    %76 = vector.extract_strided_slice %1 {offsets = [0, 6], sizes = [8, 1], strides = [1, 1]} : vector<8x9xf32> to vector<8x1xf32>
    %77 = vector.broadcast %76 : vector<8x1xf32> to vector<8x256xf32>
    %78 = arith.mulf %75, %77 : vector<8x256xf32>
    %c240_i32_17 = arith.constant 240 : i32
    %79 = tpu.dynamic_rotate %0 by %c240_i32_17 dim 1 : vector<8x256xf32>, i32 -> vector<8x256xf32>
    %80 = vector.extract_strided_slice %1 {offsets = [0, 7], sizes = [8, 1], strides = [1, 1]} : vector<8x9xf32> to vector<8x1xf32>
    %81 = vector.broadcast %80 : vector<8x1xf32> to vector<8x256xf32>
    %82 = arith.mulf %79, %81 : vector<8x256xf32>
    %83 = arith.addf %78, %82 : vector<8x256xf32>
    %c240_i32_18 = arith.constant 240 : i32
    %84 = tpu.dynamic_rotate %43 by %c240_i32_18 dim 1 : vector<8x256xf32>, i32 -> vector<8x256xf32>
    %85 = vector.extract_strided_slice %1 {offsets = [0, 8], sizes = [8, 1], strides = [1, 1]} : vector<8x9xf32> to vector<8x1xf32>
    %86 = vector.broadcast %85 : vector<8x1xf32> to vector<8x256xf32>
    %87 = arith.mulf %84, %86 : vector<8x256xf32>
    %88 = arith.addf %83, %87 : vector<8x256xf32>
    %89 = vector.broadcast %37 : vector<1x256xf32> to vector<8x256xf32>
    %90 = arith.mulf %88, %89 : vector<8x256xf32>
    %91 = arith.addf %74, %90 : vector<8x256xf32>
    %cst = arith.constant 0.000000e+00 : f32
    %92 = vector.broadcast %cst : f32 to vector<8x256xf32>
    %93 = arith.maximumf %91, %92 : vector<8x256xf32>
    %94 = vector.extract_strided_slice %93 {offsets = [0, 0], sizes = [4, 256], strides = [1, 1]} : vector<8x256xf32> to vector<4x256xf32>
    %95 = vector.shape_cast %4 : vector<8x1xf32> to vector<8x1xf32>
    %96 = vector.broadcast %95 : vector<8x1xf32> to vector<8x256xf32>
    %97 = vector.extract_strided_slice %3 {offsets = [0, 0], sizes = [8, 1], strides = [1, 1]} : vector<8x4xf32> to vector<8x1xf32>
    %98 = vector.extract_strided_slice %94 {offsets = [0, 0], sizes = [1, 256], strides = [1, 1]} : vector<4x256xf32> to vector<1x256xf32>
    %99 = vector.broadcast %97 : vector<8x1xf32> to vector<8x256xf32>
    %100 = vector.broadcast %98 : vector<1x256xf32> to vector<8x256xf32>
    %101 = arith.mulf %99, %100 : vector<8x256xf32>
    %102 = arith.addf %96, %101 : vector<8x256xf32>
    %103 = vector.extract_strided_slice %3 {offsets = [0, 1], sizes = [8, 1], strides = [1, 1]} : vector<8x4xf32> to vector<8x1xf32>
    %104 = vector.extract_strided_slice %94 {offsets = [1, 0], sizes = [1, 256], strides = [1, 1]} : vector<4x256xf32> to vector<1x256xf32>
    %105 = vector.broadcast %103 : vector<8x1xf32> to vector<8x256xf32>
    %106 = vector.broadcast %104 : vector<1x256xf32> to vector<8x256xf32>
    %107 = arith.mulf %105, %106 : vector<8x256xf32>
    %108 = arith.addf %102, %107 : vector<8x256xf32>
    %109 = vector.extract_strided_slice %3 {offsets = [0, 2], sizes = [8, 1], strides = [1, 1]} : vector<8x4xf32> to vector<8x1xf32>
    %110 = vector.extract_strided_slice %94 {offsets = [2, 0], sizes = [1, 256], strides = [1, 1]} : vector<4x256xf32> to vector<1x256xf32>
    %111 = vector.broadcast %109 : vector<8x1xf32> to vector<8x256xf32>
    %112 = vector.broadcast %110 : vector<1x256xf32> to vector<8x256xf32>
    %113 = arith.mulf %111, %112 : vector<8x256xf32>
    %114 = arith.addf %108, %113 : vector<8x256xf32>
    %115 = vector.extract_strided_slice %3 {offsets = [0, 3], sizes = [8, 1], strides = [1, 1]} : vector<8x4xf32> to vector<8x1xf32>
    %116 = vector.extract_strided_slice %94 {offsets = [3, 0], sizes = [1, 256], strides = [1, 1]} : vector<4x256xf32> to vector<1x256xf32>
    %117 = vector.broadcast %115 : vector<8x1xf32> to vector<8x256xf32>
    %118 = vector.broadcast %116 : vector<1x256xf32> to vector<8x256xf32>
    %119 = arith.mulf %117, %118 : vector<8x256xf32>
    %120 = arith.addf %114, %119 : vector<8x256xf32>
    %cst_19 = arith.constant 0.000000e+00 : f32
    %121 = vector.broadcast %cst_19 : f32 to vector<8x256xf32>
    %122 = arith.maximumf %120, %121 : vector<8x256xf32>
    %c0_20 = arith.constant 0 : index
    %c0_21 = arith.constant 0 : index
    %123 = vector.load %arg4[%c0_20, %c0_21] : memref<16x256xf32, #tpu.memory_space<vmem>>, vector<8x256xf32>
    tpu.vector_store %arg4[%c0_20, %c0_21], %122 {strides = array<i32>} : memref<16x256xf32, #tpu.memory_space<vmem>>, vector<8x256xf32>,
    %124 = vector.extract_strided_slice %93 {offsets = [4, 0], sizes = [4, 256], strides = [1, 1]} : vector<8x256xf32> to vector<4x256xf32>
    %125 = vector.shape_cast %4 : vector<8x1xf32> to vector<8x1xf32>
    %126 = vector.broadcast %125 : vector<8x1xf32> to vector<8x256xf32>
    %127 = vector.extract_strided_slice %3 {offsets = [0, 0], sizes = [8, 1], strides = [1, 1]} : vector<8x4xf32> to vector<8x1xf32>
    %128 = vector.extract_strided_slice %124 {offsets = [0, 0], sizes = [1, 256], strides = [1, 1]} : vector<4x256xf32> to vector<1x256xf32>
    %129 = vector.broadcast %127 : vector<8x1xf32> to vector<8x256xf32>
    %130 = vector.broadcast %128 : vector<1x256xf32> to vector<8x256xf32>
    %131 = arith.mulf %129, %130 : vector<8x256xf32>
    %132 = arith.addf %126, %131 : vector<8x256xf32>
    %133 = vector.extract_strided_slice %3 {offsets = [0, 1], sizes = [8, 1], strides = [1, 1]} : vector<8x4xf32> to vector<8x1xf32>
    %134 = vector.extract_strided_slice %124 {offsets = [1, 0], sizes = [1, 256], strides = [1, 1]} : vector<4x256xf32> to vector<1x256xf32>
    %135 = vector.broadcast %133 : vector<8x1xf32> to vector<8x256xf32>
    %136 = vector.broadcast %134 : vector<1x256xf32> to vector<8x256xf32>
    %137 = arith.mulf %135, %136 : vector<8x256xf32>
    %138 = arith.addf %132, %137 : vector<8x256xf32>
    %139 = vector.extract_strided_slice %3 {offsets = [0, 2], sizes = [8, 1], strides = [1, 1]} : vector<8x4xf32> to vector<8x1xf32>
    %140 = vector.extract_strided_slice %124 {offsets = [2, 0], sizes = [1, 256], strides = [1, 1]} : vector<4x256xf32> to vector<1x256xf32>
    %141 = vector.broadcast %139 : vector<8x1xf32> to vector<8x256xf32>
    %142 = vector.broadcast %140 : vector<1x256xf32> to vector<8x256xf32>
    %143 = arith.mulf %141, %142 : vector<8x256xf32>
    %144 = arith.addf %138, %143 : vector<8x256xf32>
    %145 = vector.extract_strided_slice %3 {offsets = [0, 3], sizes = [8, 1], strides = [1, 1]} : vector<8x4xf32> to vector<8x1xf32>
    %146 = vector.extract_strided_slice %124 {offsets = [3, 0], sizes = [1, 256], strides = [1, 1]} : vector<4x256xf32> to vector<1x256xf32>
    %147 = vector.broadcast %145 : vector<8x1xf32> to vector<8x256xf32>
    %148 = vector.broadcast %146 : vector<1x256xf32> to vector<8x256xf32>
    %149 = arith.mulf %147, %148 : vector<8x256xf32>
    %150 = arith.addf %144, %149 : vector<8x256xf32>
    %cst_22 = arith.constant 0.000000e+00 : f32
    %151 = vector.broadcast %cst_22 : f32 to vector<8x256xf32>
    %152 = arith.maximumf %150, %151 : vector<8x256xf32>
    %c8 = arith.constant 8 : index
    %c0_23 = arith.constant 0 : index
    %153 = vector.load %arg4[%c8, %c0_23] : memref<16x256xf32, #tpu.memory_space<vmem>>, vector<8x256xf32>
    tpu.vector_store %arg4[%c8, %c0_23], %152 {strides = array<i32>} : memref<16x256xf32, #tpu.memory_space<vmem>>, vector<8x256xf32>,
    return
  }
  func.func @transform_0(%arg0: i32) -> (i32, i32) {
    %c0_i32 = arith.constant 0 : i32
    %c0_i32_0 = arith.constant 0 : i32
    return %arg0, %c0_i32 : i32, i32
  }
  func.func @transform_1(%arg0: i32) -> (i32, i32) {
    %c0_i32 = arith.constant 0 : i32
    %c0_i32_0 = arith.constant 0 : i32
    %c0_i32_1 = arith.constant 0 : i32
    return %c0_i32, %c0_i32_0 : i32, i32
  }
  func.func @transform_2(%arg0: i32) -> (i32, i32) {
    %c0_i32 = arith.constant 0 : i32
    %c0_i32_0 = arith.constant 0 : i32
    %c0_i32_1 = arith.constant 0 : i32
    return %c0_i32, %c0_i32_0 : i32, i32
  }
  func.func @transform_3(%arg0: i32) -> (i32, i32) {
    %c0_i32 = arith.constant 0 : i32
    %c0_i32_0 = arith.constant 0 : i32
    return %arg0, %c0_i32 : i32, i32
  }
}

</mosaic_0001>

<llo_original>
// kernel: dsconv3x3_nchw.1
$region0: #{dsconv3x3_nchw.1}
  #allocation0 [shape = 'u32[]', space=smem, size = 0x4, offset = 0x4, fixed_abs, tag = 'smem constant byte address 0x4 - core index']
  #allocation1 [shape = 'u32[144,128]{1,0:T(1,128)}', space=vmem, size = 0x12000, scoped, tag = 'internal scratch']
  %s0 = inlined_call_operand.vmem [shape: f32[8,256], index: 0, kind: input, shape index: {}]
  %s1 = inlined_call_operand.vmem [shape: f32[8,10], index: 1, kind: input, shape index: {}]
  %s2 = inlined_call_operand.vmem [shape: f32[8,5], index: 2, kind: input, shape index: {}]
  %s3 = inlined_call_operand.vmem [shape: f32[16,256], index: 3, kind: output, shape index: {}]
  %s4 = sld [smem:[#allocation0]]
  $region22: #{dsconv3x3_nchw.1} parent=0
    _
  %s6 = ssub.s32 1, %s4
  %s7 = scalar_select 0, %s6, %s4
  // Predicated region
  $region2: #{dsconv3x3_nchw.1} parent=0 // pred_check
    _
  $region3: #{dsconv3x3_nchw.1} parent=0 // pred_check_branch
    %9 = sbr.rel (0) target = $region5
  $region4: #{dsconv3x3_nchw.1} parent=0 // pred_region
    _
  $region5: #{dsconv3x3_nchw.1} parent=0 // pred_fallthru
    _
  // Predicated region
  $region6: #{dsconv3x3_nchw.1} parent=0 // pred_check
    _
  $region7: #{dsconv3x3_nchw.1} parent=0 // pred_check_branch
    %11 = sbr.rel (0) target = $region9
  $region8: #{dsconv3x3_nchw.1} parent=0 // pred_region
    _
  $region9: #{dsconv3x3_nchw.1} parent=0 // pred_fallthru
    _
  // Predicated region
  $region10: #{dsconv3x3_nchw.1} parent=0 // pred_check
    _
  $region11: #{dsconv3x3_nchw.1} parent=0 // pred_check_branch
    %13 = sbr.rel (0) target = $region13
  $region12: #{dsconv3x3_nchw.1} parent=0 // pred_region
    _
  $region13: #{dsconv3x3_nchw.1} parent=0 // pred_fallthru
    _
  %v14 = vld [vmem:[%s0] sm:$0xff]
  %v15 = vld [vmem:[%s0 + $0x8] sm:$0xff]
  %v16 = vld [vmem:[%s1] sm:$0xff]
  %v17 = vld [vmem:[%s2] sm:$0xff]
  %v18 = vlaneseq
  %v19 = vand.u32 %v18, 127
  %v20 = vadd.s32 %v19, 128
  %vm21 = vcmp.lt.s32.totalorder %v19, 0
  %v22 = vsub.s32 0, %v19
  %v23 = vsel %vm21, %v22, %v19
  %v24 = vshrl.u32 %v23, 4
  %v25 = vand.u32 %v23, 15
  %v26 = vsub.s32 0, %v25
  %v27 = vsel %vm21, %v26, %v25
  %vm28 = vcmp.lt.s32.totalorder %v20, 0
  %v29 = vsub.s32 0, %v20
  %v30 = vsel %vm28, %v29, %v20
  %v31 = vshrl.u32 %v30, 4
  %v32 = vand.u32 %v30, 15
  %v33 = vsub.s32 0, %v32
  %v34 = vsel %vm28, %v33, %v32
  %vm35 = vcmp.ne.s32.totalorder %v27, 0
  %vm36 = vcmp.ne.s32.totalorder %v34, 0
  %vm37 = vcmp.lt.s32.totalorder %v27, 0
  %vm38 = vcmp.lt.s32.totalorder %v34, 0
  %vm39 = vmand %vm37, %vm35
  %vm40 = vmand %vm38, %vm36
  %v41 = vadd.s32 %v27, 16
  %v42 = vadd.s32 %v34, 16
  %v43 = vsel %vm39, %v41, %v27
  %v44 = vsel %vm40, %v42, %v34
  %vm45 = vcmp.ge.s32.totalorder %v43, 1
  %vm46 = vcmp.ge.s32.totalorder %v44, 1
  %v47 = vsel %vm45, 1, 0
  %v48 = vsel %vm46, 1, 0
  %v49 = vcvt.s32.f32 %v47
  %v50 = vcvt.s32.f32 %v48
  %vm51 = vcmp.le.s32.totalorder %v43, 14
  %vm52 = vcmp.le.s32.totalorder %v44, 14
  %v53 = vsel %vm51, 1, 0
  %v54 = vsel %vm52, 1, 0
  %v55 = vcvt.s32.f32 %v53
  %v56 = vcvt.s32.f32 %v54
  %vm57 = vcmp.ge.s32.totalorder %v19, 16
  %vm58 = vcmp.ge.s32.totalorder %v20, 16
  %v59 = vsel %vm57, 1, 0
  %v60 = vsel %vm58, 1, 0
  %v61 = vcvt.s32.f32 %v59
  %v62 = vcvt.s32.f32 %v60
  %vm63 = vcmp.lt.s32.totalorder %v19, 240
  %vm64 = vcmp.lt.s32.totalorder %v20, 240
  %v65 = vsel %vm63, 1, 0
  %v66 = vsel %vm64, 1, 0
  %v67 = vcvt.s32.f32 %v65
  %v68 = vcvt.s32.f32 %v66
  %69 = vrot.lane.b32.xlu0 %v14, 1
  %v70 = vpop.permute.xlu0 %69
  %71 = vrot.lane.b32.xlu0 %v15, 1
  %v72 = vpop.permute.xlu0 %71
  %vm73 = vcmp.lt.s32.totalorder %v19, 1
  %v74 = vsel %vm73, %v70, %v72
  %v75 = vsel %vm73, %v72, %v70
  %v76 = vmul.f32 %v75, %v49
  %v77 = vmul.f32 %v74, %v50
  %78 = vrot.lane.b32.xlu0 %v14, 127
  %v79 = vpop.permute.xlu0 %78
  %80 = vrot.lane.b32.xlu0 %v15, 127
  %v81 = vpop.permute.xlu0 %80
  %vm82 = vcmp.lt.s32.totalorder %v19, 127
  %v83 = vsel %vm82, %v79, %v81
  %v84 = vsel %vm82, %v81, %v79
  %v85 = vmul.f32 %v83, %v55
  %v86 = vmul.f32 %v84, %v56
  %88 = vset.pattern.permute.xlu0 9
  %89 = vperm.xlu0 %88, %v16
  %v90 = vpop.permute.xlu0 %89
  %92 = vrot.lane.b32.xlu0 %v76, 16
  %v93 = vpop.permute.xlu0 %92
  %94 = vrot.lane.b32.xlu0 %v77, 16
  %v95 = vpop.permute.xlu0 %94
  %vm96 = vcmp.lt.s32.totalorder %v19, 16
  %v97 = vsel %vm96, %v93, %v95
  %v98 = vsel %vm96, %v95, %v93
  %99 = vset.pattern.permute.xlu0 0
  %100 = vperm.xlu0 %99, %v16
  %v101 = vpop.permute.xlu0 %100
  %v103 = vmul.f32 %v98, %v101
  %v104 = vmul.f32 %v97, %v101
  %105 = vrot.lane.b32.xlu0 %v14, 16
  %v106 = vpop.permute.xlu0 %105
  %107 = vrot.lane.b32.xlu0 %v15, 16
  %v108 = vpop.permute.xlu0 %107
  %v109 = vsel %vm96, %v106, %v108
  %v110 = vsel %vm96, %v108, %v106
  %111 = vset.pattern.permute.xlu0 1
  %112 = vperm.xlu0 %111, %v16
  %v113 = vpop.permute.xlu0 %112
  %v115 = vmul.f32 %v110, %v113
  %v116 = vmul.f32 %v109, %v113
  %v117 = vadd.f32 %v103, %v115
  %v118 = vadd.f32 %v104, %v116
  %119 = vrot.lane.b32.xlu0 %v85, 16
  %v120 = vpop.permute.xlu0 %119
  %121 = vrot.lane.b32.xlu0 %v86, 16
  %v122 = vpop.permute.xlu0 %121
  %v123 = vsel %vm96, %v120, %v122
  %v124 = vsel %vm96, %v122, %v120
  %125 = vset.pattern.permute.xlu0 2
  %126 = vperm.xlu0 %125, %v16
  %v127 = vpop.permute.xlu0 %126
  %v129 = vmul.f32 %v124, %v127
  %v130 = vmul.f32 %v123, %v127
  %v131 = vadd.f32 %v117, %v129
  %v132 = vadd.f32 %v118, %v130
  %v133 = vmul.f32 %v131, %v61
  %v134 = vmul.f32 %v132, %v62
  %v135 = vadd.f32 %v90, %v133
  %v136 = vadd.f32 %v90, %v134
  %137 = vset.pattern.permute.xlu0 3
  %138 = vperm.xlu0 %137, %v16
  %v139 = vpop.permute.xlu0 %138
  %v141 = vmul.f32 %v76, %v139
  %v142 = vmul.f32 %v77, %v139
  %143 = vset.pattern.permute.xlu0 4
  %144 = vperm.xlu0 %143, %v16
  %v145 = vpop.permute.xlu0 %144
  %v147 = vmul.f32 %v14, %v145
  %v148 = vmul.f32 %v15, %v145
  %v149 = vadd.f32 %v141, %v147
  %v150 = vadd.f32 %v142, %v148
  %151 = vset.pattern.permute.xlu0 5
  %152 = vperm.xlu0 %151, %v16
  %v153 = vpop.permute.xlu0 %152
  %v155 = vmul.f32 %v85, %v153
  %v156 = vmul.f32 %v86, %v153
  %v157 = vadd.f32 %v149, %v155
  %v158 = vadd.f32 %v150, %v156
  %v159 = vadd.f32 %v135, %v157
  %v160 = vadd.f32 %v136, %v158
  %161 = vrot.lane.b32.xlu0 %v76, 112
  %v162 = vpop.permute.xlu0 %161
  %163 = vrot.lane.b32.xlu0 %v77, 112
  %v164 = vpop.permute.xlu0 %163
  %vm165 = vcmp.lt.s32.totalorder %v19, 112
  %v166 = vsel %vm165, %v162, %v164
  %v167 = vsel %vm165, %v164, %v162
  %168 = vset.pattern.permute.xlu0 6
  %169 = vperm.xlu0 %168, %v16
  %v170 = vpop.permute.xlu0 %169
  %v172 = vmul.f32 %v166, %v170
  %v173 = vmul.f32 %v167, %v170
  %174 = vrot.lane.b32.xlu0 %v14, 112
  %v175 = vpop.permute.xlu0 %174
  %176 = vrot.lane.b32.xlu0 %v15, 112
  %v177 = vpop.permute.xlu0 %176
  %v178 = vsel %vm165, %v175, %v177
  %v179 = vsel %vm165, %v177, %v175
  %180 = vset.pattern.permute.xlu0 7
  %181 = vperm.xlu0 %180, %v16
  %v182 = vpop.permute.xlu0 %181
  %v184 = vmul.f32 %v178, %v182
  %v185 = vmul.f32 %v179, %v182
  %v186 = vadd.f32 %v172, %v184
  %v187 = vadd.f32 %v173, %v185
  %188 = vrot.lane.b32.xlu0 %v85, 112
  %v189 = vpop.permute.xlu0 %188
  %190 = vrot.lane.b32.xlu0 %v86, 112
  %v191 = vpop.permute.xlu0 %190
  %v192 = vsel %vm165, %v189, %v191
  %v193 = vsel %vm165, %v191, %v189
  %194 = vset.pattern.permute.xlu0 8
  %195 = vperm.xlu0 %194, %v16
  %v196 = vpop.permute.xlu0 %195
  %v198 = vmul.f32 %v192, %v196
  %v199 = vmul.f32 %v193, %v196
  %v200 = vadd.f32 %v186, %v198
  %v201 = vadd.f32 %v187, %v199
  %v202 = vmul.f32 %v200, %v67
  %v203 = vmul.f32 %v201, %v68
  %v204 = vadd.f32 %v159, %v202
  %v205 = vadd.f32 %v160, %v203
  %v206 = vmax.f32 %v204, 0.0
  %v207 = vmax.f32 %v205, 0.0
  %209 = vset.pattern.permute.xlu0 4
  %210 = vperm.xlu0 %209, %v17
  %v211 = vpop.permute.xlu0 %210
  %213 = vset.pattern.permute.xlu0 0
  %214 = vperm.xlu0 %213, %v17
  %v215 = vpop.permute.xlu0 %214
  %v217 = vlaneseq
  %v218 = vshrl.u32 %v217, 7
  %v219 = vsub.s32 0, %v218
  %v220 = vrot.slane %v206, %v219
  %v221 = vlaneseq
  %v222 = vshrl.u32 %v221, 7
  %v223 = vsub.s32 0, %v222
  %v224 = vrot.slane %v207, %v223
  %v225 = vmul.f32 %v215, %v220
  %v226 = vmul.f32 %v215, %v224
  %v227 = vadd.f32 %v211, %v225
  %v228 = vadd.f32 %v211, %v226
  %229 = vset.pattern.permute.xlu0 1
  %230 = vperm.xlu0 %229, %v17
  %v231 = vpop.permute.xlu0 %230
  %v233 = vlaneseq
  %v234 = vshrl.u32 %v233, 7
  %v235 = vsub.s32 1, %v234
  %v236 = vrot.slane %v206, %v235
  %v237 = vlaneseq
  %v238 = vshrl.u32 %v237, 7
  %v239 = vsub.s32 1, %v238
  %v240 = vrot.slane %v207, %v239
  %v241 = vmul.f32 %v231, %v236
  %v242 = vmul.f32 %v231, %v240
  %v243 = vadd.f32 %v227, %v241
  %v244 = vadd.f32 %v228, %v242
  %245 = vset.pattern.permute.xlu0 2
  %246 = vperm.xlu0 %245, %v17
  %v247 = vpop.permute.xlu0 %246
  %v249 = vlaneseq
  %v250 = vshrl.u32 %v249, 7
  %v251 = vsub.s32 2, %v250
  %v252 = vrot.slane %v206, %v251
  %v253 = vlaneseq
  %v254 = vshrl.u32 %v253, 7
  %v255 = vsub.s32 2, %v254
  %v256 = vrot.slane %v207, %v255
  %v257 = vmul.f32 %v247, %v252
  %v258 = vmul.f32 %v247, %v256
  %v259 = vadd.f32 %v243, %v257
  %v260 = vadd.f32 %v244, %v258
  %261 = vset.pattern.permute.xlu0 3
  %262 = vperm.xlu0 %261, %v17
  %v263 = vpop.permute.xlu0 %262
  %v265 = vlaneseq
  %v266 = vshrl.u32 %v265, 7
  %v267 = vsub.s32 3, %v266
  %v268 = vrot.slane %v206, %v267
  %v269 = vlaneseq
  %v270 = vshrl.u32 %v269, 7
  %v271 = vsub.s32 3, %v270
  %v272 = vrot.slane %v207, %v271
  %v273 = vmul.f32 %v263, %v268
  %v274 = vmul.f32 %v263, %v272
  %v275 = vadd.f32 %v259, %v273
  %v276 = vadd.f32 %v260, %v274
  %v277 = vmax.f32 %v275, 0.0
  %v278 = vmax.f32 %v276, 0.0
  %279 = vst [vmem:[%s3] sm:$0xff] %v277
  %280 = vst [vmem:[%s3 + $0x8] sm:$0xff] %v278
  %v281 = vlaneseq
  %v282 = vshrl.u32 %v281, 7
  %v283 = vsub.s32 4, %v282
  %v284 = vrot.slane %v206, %v283
  %v285 = vlaneseq
  %v286 = vshrl.u32 %v285, 7
  %v287 = vsub.s32 4, %v286
  %v288 = vrot.slane %v207, %v287
  %v289 = vmul.f32 %v215, %v284
  %v290 = vmul.f32 %v215, %v288
  %v291 = vadd.f32 %v211, %v289
  %v292 = vadd.f32 %v211, %v290
  %v293 = vlaneseq
  %v294 = vshrl.u32 %v293, 7
  %v295 = vsub.s32 5, %v294
  %v296 = vrot.slane %v206, %v295
  %v297 = vlaneseq
  %v298 = vshrl.u32 %v297, 7
  %v299 = vsub.s32 5, %v298
  %v300 = vrot.slane %v207, %v299
  %v301 = vmul.f32 %v231, %v296
  %v302 = vmul.f32 %v231, %v300
  %v303 = vadd.f32 %v291, %v301
  %v304 = vadd.f32 %v292, %v302
  %v305 = vlaneseq
  %v306 = vshrl.u32 %v305, 7
  %v307 = vsub.s32 6, %v306
  %v308 = vrot.slane %v206, %v307
  %v309 = vlaneseq
  %v310 = vshrl.u32 %v309, 7
  %v311 = vsub.s32 6, %v310
  %v312 = vrot.slane %v207, %v311
  %v313 = vmul.f32 %v247, %v308
  %v314 = vmul.f32 %v247, %v312
  %v315 = vadd.f32 %v303, %v313
  %v316 = vadd.f32 %v304, %v314
  %v317 = vlaneseq
  %v318 = vshrl.u32 %v317, 7
  %v319 = vsub.s32 7, %v318
  %v320 = vrot.slane %v206, %v319
  %v321 = vlaneseq
  %v322 = vshrl.u32 %v321, 7
  %v323 = vsub.s32 7, %v322
  %v324 = vrot.slane %v207, %v323
  %v325 = vmul.f32 %v263, %v320
  %v326 = vmul.f32 %v263, %v324
  %v327 = vadd.f32 %v315, %v325
  %v328 = vadd.f32 %v316, %v326
  %v329 = vmax.f32 %v327, 0.0
  %v330 = vmax.f32 %v328, 0.0
  %331 = vst [vmem:[%s3 + $0x10] sm:$0xff] %v329
  %332 = vst [vmem:[%s3 + $0x18] sm:$0xff] %v330
  // Predicated region
  $region14: #{dsconv3x3_nchw.1} parent=0 // pred_check
    _
  $region15: #{dsconv3x3_nchw.1} parent=0 // pred_check_branch
    %334 = sbr.rel (0) target = $region17
  $region16: #{dsconv3x3_nchw.1} parent=0 // pred_region
    _
  $region17: #{dsconv3x3_nchw.1} parent=0 // pred_fallthru
    _
  // Predicated region
  $region18: #{dsconv3x3_nchw.1} parent=0 // pred_check
    _
  $region19: #{dsconv3x3_nchw.1} parent=0 // pred_check_branch
    %336 = sbr.rel (0) target = $region21
  $region20: #{dsconv3x3_nchw.1} parent=0 // pred_region
    _
  $region21: #{dsconv3x3_nchw.1} parent=0 // pred_fallthru
    _

</llo_original>
